<compile_context>
chip_gen: v7x
topology: tpu7x:2x2x1
jax: 0.10.0
libtpu: 0.0.40
codegen_flags: <defaults>
</compile_context>

<pallas_src>
import functools

import jax
import jax.numpy as jnp
from jax.experimental import pallas as pl
from jax.experimental.pallas import tpu as pltpu


# ---------------------------------------------------------------------------
# Config mirroring the PyTorch module's hyperparameters.
# ---------------------------------------------------------------------------
class Config:
    num_classes = 10
    outc_list = (32, 64)              # hidden layer widths
    use_batch_normalization = False   # TODO(synk): BatchNorm1d branch not implemented (off here)
    activation = "relu"
    init = "uniform"                  # weights ~ U(-1, 1), biases ~ U(-1, 1)
    order_pts = True                  # sort points by x-coordinate before flatten


LANE = 128        # TPU lane width (last-dim tile)
SUBLANE = 8       # f32 sublane tile
NEG_PAD = -1e30   # logit value for padded class columns (exp -> 0)


def _round_up(x, m):
    return ((x + m - 1) // m) * m


def _cdiv(a, b):
    return (a + b - 1) // b


def _activation(h, name):
    if name == "relu":
        return jnp.maximum(h, 0.0)
    if name == "tanh":
        return jnp.tanh(h)
    if name == "elu":
        return jnp.where(h > 0, h, jnp.expm1(h))
    if name == "leaky_relu":
        return jnp.where(h > 0, h, 0.01 * h)
    raise ValueError(f"unsupported activation: {name}")


# ---------------------------------------------------------------------------
# Pallas kernel: fused MLP + log_softmax on one batch tile.
#   x_ref:   [TB, F]  flattened (sorted) points, bf16 (or f32)
#   wK_ref:  [dK_in, 128] bf16 (or f32), bK_ref: [1, 128] f32  (VMEM-resident)
#   out_ref: [TB, C_out] f32 log-probabilities (first num_classes cols valid)
# ---------------------------------------------------------------------------
def fcnet_kernel(x_ref, *refs, activation="relu"):
    out_ref = refs[-1]
    param_refs = refs[:-1]                 # (w0, b0, w1, b1, ..., w_out, b_out)
    n_layers = len(param_refs) // 2

    h = x_ref[...]                         # bf16 (or f32) activations
    for k in range(n_layers):
        w = param_refs[2 * k][...]         # lane-padded weight, MXU dtype
        b = param_refs[2 * k + 1][...]     # [1, 128] f32 -> broadcasts over rows
        acc = jnp.dot(h, w, preferred_element_type=jnp.float32) + b
        if k < n_layers - 1:
            # hidden layers: activation in f32, recast to MXU dtype for next dot
            h = _activation(acc, activation).astype(w.dtype)
        else:
            h = acc                        # final logits stay f32

    # log_softmax over the lane-padded class dimension; padded columns carry
    # NEG_PAD bias so exp() underflows to 0 and they drop out of the denom.
    m = jnp.max(h, axis=-1, keepdims=True)
    shifted = h - m
    lse = jnp.log(jnp.sum(jnp.exp(shifted), axis=-1, keepdims=True))
    logp = shifted - lse                                   # [TB, 128] f32
    out_ref[...] = logp[:, : out_ref.shape[-1]].astype(out_ref.dtype)


# ---------------------------------------------------------------------------
# Parameter prep: pad to lane-dense [in, 128] layout; weights in compute dtype,
# biases kept f32 (added after the f32 accumulation).
# ---------------------------------------------------------------------------
def pad_params(params, compute_dtype):
    """params: list of (W [in, out], b [1, out]) in logical widths."""
    flat = []
    n = len(params)
    prev_out_pad = None
    for k, (w, b) in enumerate(params):
        d_in, d_out = w.shape
        in_pad = d_in if k == 0 else prev_out_pad            # match prev layer pad
        out_pad = _round_up(d_out, LANE)
        w_p = jnp.zeros((in_pad, out_pad), jnp.float32).at[:d_in, :d_out].set(w)
        # final layer: pad bias with a huge negative so padded logits vanish
        fill = NEG_PAD if k == n - 1 else 0.0
        b_p = jnp.full((1, out_pad), fill, jnp.float32).at[:, :d_out].set(b)
        flat.extend([w_p.astype(compute_dtype), b_p])
        prev_out_pad = out_pad
    return flat


def _pick_batch_tile(B, F, itemsize):
    """Batch tile: big enough to amortize ~0.35us/step, >=2 steps when B>512."""
    if B <= 512:
        return B                                   # one exact full-batch block
    tb = min(2048, _round_up(_cdiv(B, 2), 512))    # >=2 steps for v7x megacore
    # Cap so the double-buffered x stream stays well under scoped VMEM default.
    vmem_cap = max(512, ((4 << 20) // max(1, F * itemsize)) // 512 * 512)
    return min(tb, vmem_cap)


# ---------------------------------------------------------------------------
# Forward pass wrapper (point sort + flatten in XLA, fused MLP in Pallas).
# ---------------------------------------------------------------------------
def fcnet_forward(x, params, config, use_bf16=True):
    """x: [B, N, 2] float32. params: list of (W [in,out], b [1,out]) f32."""
    if config.order_pts:
        # torch.sort along dim=1 on the x-coordinate, then gather both coords.
        # TODO(synk): jnp.argsort is stable; torch.sort is not - ties may order
        # differently (exact-parity only concern).
        idx = jnp.argsort(x[:, :, 0], axis=1)                 # [B, N]
        x = jnp.take_along_axis(x, idx[:, :, None], axis=1)   # gather rows
    flat = x.reshape(x.shape[0], -1).astype(jnp.float32)      # [B, F]

    B, F = flat.shape
    C = params[-1][0].shape[1]
    C_out = _round_up(C, SUBLANE)          # narrow output stream (16 cols for 10)

    compute_dtype = jnp.bfloat16 if use_bf16 else jnp.float32
    itemsize = 2 if use_bf16 else 4
    flat = flat.astype(compute_dtype)
    flat_params = pad_params(params, compute_dtype)

    TB = _pick_batch_tile(B, F, itemsize)
    grid = (_cdiv(B, TB),)                 # no batch pad copy; ragged tail masked

    in_specs = [pl.BlockSpec((TB, F), lambda i: (i, 0))]
    for p in flat_params:
        # Constant index_map -> parameter tile stays resident in VMEM across steps.
        in_specs.append(pl.BlockSpec(p.shape, lambda i: (0, 0)))
    out_specs = pl.BlockSpec((TB, C_out), lambda i: (i, 0))

    # Advisory cost hint for XLA scheduling around the custom call.
    n_layers = len(flat_params) // 2
    flops = 2 * B * sum(flat_params[2 * k].shape[0] * flat_params[2 * k].shape[1]
                        for k in range(n_layers))
    trans = B * (flat_params[-2].shape[1] + 1)            # exps + log per row
    bytes_accessed = (int(flat.size) * itemsize
                      + sum(int(p.size) * p.dtype.itemsize for p in flat_params)
                      + B * C_out * 4)

    out = pl.pallas_call(
        functools.partial(fcnet_kernel, activation=config.activation),
        out_shape=jax.ShapeDtypeStruct((B, C_out), jnp.float32),
        grid=grid,
        in_specs=in_specs,
        out_specs=out_specs,
        compiler_params=pltpu.CompilerParams(
            dimension_semantics=("parallel",)),
        cost_estimate=pl.CostEstimate(
            flops=int(flops),
            transcendentals=int(trans),
            bytes_accessed=int(bytes_accessed)),
    )(flat, *flat_params)

    # Strip the (small) column padding on the class dim.
    return out[:, :C]


# ---------------------------------------------------------------------------
# Deterministic parameter init (config.init == 'uniform': U(-1, 1)).
# ---------------------------------------------------------------------------
def init_params(key, inc, config):
    dims = [inc] + list(config.outc_list) + [config.num_classes]
    params = []
    for i in range(len(dims) - 1):
        key, kw, kb = jax.random.split(key, 3)
        w = jax.random.uniform(kw, (dims[i], dims[i + 1]),
                               minval=-1.0, maxval=1.0, dtype=jnp.float32)
        b = jax.random.uniform(kb, (1, dims[i + 1]),
                               minval=-1.0, maxval=1.0, dtype=jnp.float32)
        params.append((w, b))
    return params


# Pure-JAX reference with matching precision (bf16 operands, f32 accumulation).
def fcnet_reference(x, params, config, use_bf16=True):
    if config.order_pts:
        idx = jnp.argsort(x[:, :, 0], axis=1)
        x = jnp.take_along_axis(x, idx[:, :, None], axis=1)
    cdt = jnp.bfloat16 if use_bf16 else jnp.float32
    h = x.reshape(x.shape[0], -1).astype(cdt)
    for k, (w, b) in enumerate(params):
        acc = jnp.dot(h, w.astype(cdt), preferred_element_type=jnp.float32) + b
        if k < len(params) - 1:
            h = _activation(acc, config.activation).astype(cdt)
        else:
            h = acc
    return jax.nn.log_softmax(h, axis=1)


if __name__ == "__main__":
    config = Config()
    B, N = 4, 8                      # input: B x N x 2  (points with xy coords)
    inc = N * 2                      # flattened feature dim fed to Linear-0

    key = jax.random.PRNGKey(0)
    key, kx = jax.random.split(key)
    x = jax.random.normal(kx, (B, N, 2), dtype=jnp.float32)
    params = init_params(key, inc, config)

    out = fcnet_forward(x, params, config)
    out = jax.block_until_ready(out)

    ref = fcnet_reference(x, params, config)
    assert out.shape == (B, config.num_classes)
    assert jnp.allclose(out, ref, atol=1e-3, rtol=1e-3), "mismatch vs reference"
    # log_softmax rows must exp-sum to 1
    assert jnp.allclose(jnp.sum(jnp.exp(out), axis=1), 1.0, atol=1e-3)

    print("KERNEL_OK")
</pallas_src>

<mosaic_0001>
module attributes {stable_mosaic.version = 11 : i64} {
  func.func @fcnet_kernel(%arg0: i32, %arg1: memref<4x16xbf16, #tpu.memory_space<vmem>>, %arg2: memref<16x128xbf16, #tpu.memory_space<vmem>>, %arg3: memref<1x128xf32, #tpu.memory_space<vmem>>, %arg4: memref<128x128xbf16, #tpu.memory_space<vmem>>, %arg5: memref<1x128xf32, #tpu.memory_space<vmem>>, %arg6: memref<128x128xbf16, #tpu.memory_space<vmem>>, %arg7: memref<1x128xf32, #tpu.memory_space<vmem>>, %arg8: memref<4x16xf32, #tpu.memory_space<vmem>>) attributes {dimension_semantics = [#tpu.dimension_semantics<parallel>], iteration_bounds = array<i64: 1>, scalar_prefetch = 0 : i64, scratch_operands = 0 : i64, tpu.core_type = #tpu.core_type<tc>, window_params = [{transform_indices = @transform_0, window_bounds = array<i64: 4, 16>}, {pipeline_mode = #tpu.pipeline_mode<synchronous>, transform_indices = @transform_1, window_bounds = array<i64: 16, 128>}, {pipeline_mode = #tpu.pipeline_mode<synchronous>, transform_indices = @transform_2, window_bounds = array<i64: 1, 128>}, {pipeline_mode = #tpu.pipeline_mode<synchronous>, transform_indices = @transform_3, window_bounds = array<i64: 128, 128>}, {pipeline_mode = #tpu.pipeline_mode<synchronous>, transform_indices = @transform_4, window_bounds = array<i64: 1, 128>}, {pipeline_mode = #tpu.pipeline_mode<synchronous>, transform_indices = @transform_5, window_bounds = array<i64: 128, 128>}, {pipeline_mode = #tpu.pipeline_mode<synchronous>, transform_indices = @transform_6, window_bounds = array<i64: 1, 128>}, {transform_indices = @transform_7, window_bounds = array<i64: 4, 16>}]} {
    %c0 = arith.constant 0 : index
    %c0_0 = arith.constant 0 : index
    %0 = vector.load %arg1[%c0, %c0_0] : memref<4x16xbf16, #tpu.memory_space<vmem>>, vector<4x16xbf16>
    %c0_1 = arith.constant 0 : index
    %c0_2 = arith.constant 0 : index
    %1 = vector.load %arg2[%c0_1, %c0_2] : memref<16x128xbf16, #tpu.memory_space<vmem>>, vector<16x128xbf16>
    %c0_3 = arith.constant 0 : index
    %c0_4 = arith.constant 0 : index
    %2 = vector.load %arg3[%c0_3, %c0_4] : memref<1x128xf32, #tpu.memory_space<vmem>>, vector<1x128xf32>
    %cst = arith.constant dense<0.000000e+00> : vector<4x128xf32>
    %3 = tpu.matmul %0, %1, %cst {dimension_numbers = #tpu.dot_dimension_numbers<[1], [0], [0], [1], [0, 0, 1, 1], [], []>} : vector<4x16xbf16>, vector<16x128xbf16>, vector<4x128xf32> -> vector<4x128xf32>
    %4 = vector.broadcast %2 : vector<1x128xf32> to vector<4x128xf32>
    %5 = arith.addf %3, %4 : vector<4x128xf32>
    %cst_5 = arith.constant 0.000000e+00 : f32
    %6 = vector.broadcast %cst_5 : f32 to vector<4x128xf32>
    %7 = arith.maximumf %5, %6 : vector<4x128xf32>
    %8 = arith.truncf %7 : vector<4x128xf32> to vector<4x128xbf16>
    %c0_6 = arith.constant 0 : index
    %c0_7 = arith.constant 0 : index
    %9 = vector.load %arg4[%c0_6, %c0_7] : memref<128x128xbf16, #tpu.memory_space<vmem>>, vector<128x128xbf16>
    %c0_8 = arith.constant 0 : index
    %c0_9 = arith.constant 0 : index
    %10 = vector.load %arg5[%c0_8, %c0_9] : memref<1x128xf32, #tpu.memory_space<vmem>>, vector<1x128xf32>
    %cst_10 = arith.constant dense<0.000000e+00> : vector<4x128xf32>
    %11 = tpu.matmul %8, %9, %cst_10 {dimension_numbers = #tpu.dot_dimension_numbers<[1], [0], [0], [1], [0, 0, 1, 1], [], []>} : vector<4x128xbf16>, vector<128x128xbf16>, vector<4x128xf32> -> vector<4x128xf32>
    %12 = vector.broadcast %10 : vector<1x128xf32> to vector<4x128xf32>
    %13 = arith.addf %11, %12 : vector<4x128xf32>
    %cst_11 = arith.constant 0.000000e+00 : f32
    %14 = vector.broadcast %cst_11 : f32 to vector<4x128xf32>
    %15 = arith.maximumf %13, %14 : vector<4x128xf32>
    %16 = arith.truncf %15 : vector<4x128xf32> to vector<4x128xbf16>
    %c0_12 = arith.constant 0 : index
    %c0_13 = arith.constant 0 : index
    %17 = vector.load %arg6[%c0_12, %c0_13] : memref<128x128xbf16, #tpu.memory_space<vmem>>, vector<128x128xbf16>
    %c0_14 = arith.constant 0 : index
    %c0_15 = arith.constant 0 : index
    %18 = vector.load %arg7[%c0_14, %c0_15] : memref<1x128xf32, #tpu.memory_space<vmem>>, vector<1x128xf32>
    %cst_16 = arith.constant dense<0.000000e+00> : vector<4x128xf32>
    %19 = tpu.matmul %16, %17, %cst_16 {dimension_numbers = #tpu.dot_dimension_numbers<[1], [0], [0], [1], [0, 0, 1, 1], [], []>} : vector<4x128xbf16>, vector<128x128xbf16>, vector<4x128xf32> -> vector<4x128xf32>
    %20 = vector.broadcast %18 : vector<1x128xf32> to vector<4x128xf32>
    %21 = arith.addf %19, %20 : vector<4x128xf32>
    %cst_17 = arith.constant dense<0xFF800000> : vector<4xf32>
    %22 = vector.multi_reduction <maximumf>, %21, %cst_17 [1] : vector<4x128xf32> to vector<4xf32>
    %23 = vector.shape_cast %22 : vector<4xf32> to vector<4x1xf32>
    %24 = vector.broadcast %23 : vector<4x1xf32> to vector<4x128xf32>
    %25 = arith.subf %21, %24 : vector<4x128xf32>
    %26 = math.exp %25 : vector<4x128xf32>
    %cst_18 = arith.constant dense<0.000000e+00> : vector<4xf32>
    %27 = vector.multi_reduction <add>, %26, %cst_18 [1] : vector<4x128xf32> to vector<4xf32>
    %28 = vector.shape_cast %27 : vector<4xf32> to vector<4x1xf32>
    %29 = math.log %28 : vector<4x1xf32>
    %30 = vector.broadcast %29 : vector<4x1xf32> to vector<4x128xf32>
    %31 = arith.subf %25, %30 : vector<4x128xf32>
    %32 = vector.extract_strided_slice %31 {offsets = [0, 0], sizes = [4, 16], strides = [1, 1]} : vector<4x128xf32> to vector<4x16xf32>
    %c0_19 = arith.constant 0 : index
    %c0_20 = arith.constant 0 : index
    %33 = vector.load %arg8[%c0_19, %c0_20] : memref<4x16xf32, #tpu.memory_space<vmem>>, vector<4x16xf32>
    tpu.vector_store %arg8[%c0_19, %c0_20], %32 {strides = array<i32>} : memref<4x16xf32, #tpu.memory_space<vmem>>, vector<4x16xf32>,
    return
  }
  func.func @transform_0(%arg0: i32) -> (i32, i32) {
    %c0_i32 = arith.constant 0 : i32
    %c0_i32_0 = arith.constant 0 : i32
    return %arg0, %c0_i32 : i32, i32
  }
  func.func @transform_1(%arg0: i32) -> (i32, i32) {
    %c0_i32 = arith.constant 0 : i32
    %c0_i32_0 = arith.constant 0 : i32
    %c0_i32_1 = arith.constant 0 : i32
    return %c0_i32, %c0_i32_0 : i32, i32
  }
  func.func @transform_2(%arg0: i32) -> (i32, i32) {
    %c0_i32 = arith.constant 0 : i32
    %c0_i32_0 = arith.constant 0 : i32
    %c0_i32_1 = arith.constant 0 : i32
    return %c0_i32, %c0_i32_0 : i32, i32
  }
  func.func @transform_3(%arg0: i32) -> (i32, i32) {
    %c0_i32 = arith.constant 0 : i32
    %c0_i32_0 = arith.constant 0 : i32
    %c0_i32_1 = arith.constant 0 : i32
    return %c0_i32, %c0_i32_0 : i32, i32
  }
  func.func @transform_4(%arg0: i32) -> (i32, i32) {
    %c0_i32 = arith.constant 0 : i32
    %c0_i32_0 = arith.constant 0 : i32
    %c0_i32_1 = arith.constant 0 : i32
    return %c0_i32, %c0_i32_0 : i32, i32
  }
  func.func @transform_5(%arg0: i32) -> (i32, i32) {
    %c0_i32 = arith.constant 0 : i32
    %c0_i32_0 = arith.constant 0 : i32
    %c0_i32_1 = arith.constant 0 : i32
    return %c0_i32, %c0_i32_0 : i32, i32
  }
  func.func @transform_6(%arg0: i32) -> (i32, i32) {
    %c0_i32 = arith.constant 0 : i32
    %c0_i32_0 = arith.constant 0 : i32
    %c0_i32_1 = arith.constant 0 : i32
    return %c0_i32, %c0_i32_0 : i32, i32
  }
  func.func @transform_7(%arg0: i32) -> (i32, i32) {
    %c0_i32 = arith.constant 0 : i32
    %c0_i32_0 = arith.constant 0 : i32
    return %arg0, %c0_i32 : i32, i32
  }
}

</mosaic_0001>

<llo_original>
// kernel: tpu_custom_call.1
$region0: #{tpu_custom_call.1}
  #allocation0 [shape = 'u32[]', space=smem, size = 0x4, offset = 0x4, fixed_abs, tag = 'smem constant byte address 0x4 - core index']
  #allocation1 [shape = 'u32[144,128]{1,0:T(1,128)}', space=vmem, size = 0x12000, scoped, tag = 'internal scratch']
  %s0 = inlined_call_operand.hbm [shape: bf16[4,16], index: 0, kind: input, shape index: {}]
  %s1 = inlined_call_operand.hbm [shape: bf16[16,128], index: 1, kind: input, shape index: {}]
  %s2 = inlined_call_operand.vmem [shape: f32[1,128], index: 2, kind: input, shape index: {}]
  %s3 = inlined_call_operand.hbm [shape: bf16[128,128], index: 3, kind: input, shape index: {}]
  %s4 = inlined_call_operand.vmem [shape: f32[1,128], index: 4, kind: input, shape index: {}]
  %s5 = inlined_call_operand.hbm [shape: bf16[128,128], index: 5, kind: input, shape index: {}]
  %s6 = inlined_call_operand.vmem [shape: f32[1,128], index: 6, kind: input, shape index: {}]
  %s7 = inlined_call_operand.hbm [shape: f32[4,16], index: 7, kind: output, shape index: {}]
  %s8 = sld [smem:[#allocation0]]
  $region54: #{tpu_custom_call.1} parent=0
    _
  %s10 = ssub.s32 1, %s8
  %s11 = scalar_select 0, %s10, %s8
  $region1: #{tpu_custom_call.1} parent=0
    #allocation2 [shape = 'u8[1024]{0}', space=vmem, size = 0x400, scoped, tag = 'input window, operand 0, single buffered']
    #allocation3 [shape = 's32[1]{0}', space=sflag, size = 0x4, scoped, tag = 'scoped memory for tpu_custom_call.1']
    #allocation4 [shape = 's32[1]{0}', space=sflag, size = 0x4, scoped, tag = 'scoped memory for tpu_custom_call.1']
    #allocation5 [shape = 'u8[4096]{0}', space=vmem, size = 0x1000, scoped, tag = 'input window, operand 1, single buffered']
    #allocation6 [shape = 's32[1]{0}', space=sflag, size = 0x4, scoped, tag = 'scoped memory for tpu_custom_call.1']
    #allocation7 [shape = 'u8[32768]{0}', space=vmem, size = 0x8000, scoped, tag = 'input window, operand 3, single buffered']
    #allocation8 [shape = 'u8[32768]{0}', space=vmem, size = 0x8000, scoped, tag = 'input window, operand 5, single buffered']
    #allocation9 [shape = 's32[1]{0}', space=sflag, size = 0x4, scoped, tag = 'scoped memory for tpu_custom_call.1']
    #allocation10 [shape = 'u8[2048]{0}', space=vmem, size = 0x800, scoped, tag = 'output window, operand 0, single buffered']
    %12 = vsyncpa [#allocation3], 0
    %13 = vsyncpa [#allocation6], 0
    %14 = vsyncpa [#allocation9], 0
    %15 = vsyncpa [#allocation4], 0
    // Predicated region
    $region2: #{tpu_custom_call.1} parent=1 // pred_check
      _
    $region3: #{tpu_custom_call.1} parent=1 // pred_check_branch
      %17 = sbr.rel (0) target = $region5
    $region4: #{tpu_custom_call.1} parent=1 // pred_region
      %s19 = ssub.s32 32, 32
      %20 = vsyncadd [#allocation3], %s19
      %s22 = sshll.u32 [#allocation2], 4
      %s23 = int_to_ptr.vmem [resolvable:$true] %s22
      %25 = dma.hbm_to_vmem [thread:$0]  %s0, 32, %s23, [#allocation3]
    $region5: #{tpu_custom_call.1} parent=1 // pred_fallthru
      _
    // Predicated region
    $region6: #{tpu_custom_call.1} parent=1 // pred_check
      _
    $region7: #{tpu_custom_call.1} parent=1 // pred_check_branch
      %27 = sbr.rel (0) target = $region9
    $region8: #{tpu_custom_call.1} parent=1 // pred_region
      %s29 = ssub.s32 128, 128
      %30 = vsyncadd [#allocation6], %s29
      %s31 = sshll.u32 [#allocation5], 4
      %s32 = int_to_ptr.vmem [resolvable:$true] %s31
      %37 = dma.hbm_to_vmem [thread:$0]  %s1, 128, %s32, [#allocation6], 64, 64, 4
    $region9: #{tpu_custom_call.1} parent=1 // pred_fallthru
      _
    // Predicated region
    $region10: #{tpu_custom_call.1} parent=1 // pred_check
      _
    $region11: #{tpu_custom_call.1} parent=1 // pred_check_branch
      %39 = sbr.rel (0) target = $region13
    $region12: #{tpu_custom_call.1} parent=1 // pred_region
      _
    $region13: #{tpu_custom_call.1} parent=1 // pred_fallthru
      _
    // Predicated region
    $region14: #{tpu_custom_call.1} parent=1 // pred_check
      _
    $region15: #{tpu_custom_call.1} parent=1 // pred_check_branch
      %41 = sbr.rel (0) target = $region17
    $region16: #{tpu_custom_call.1} parent=1 // pred_region
      %s43 = ssub.s32 1024, 1024
      %44 = vsyncadd [#allocation6], %s43
      %s45 = sshll.u32 [#allocation7], 4
      %s46 = int_to_ptr.vmem [resolvable:$true] %s45
      %51 = dma.hbm_to_vmem [thread:$0]  %s3, 1024, %s46, [#allocation6], 64, 64, 4
    $region17: #{tpu_custom_call.1} parent=1 // pred_fallthru
      _
    // Predicated region
    $region18: #{tpu_custom_call.1} parent=1 // pred_check
      _
    $region19: #{tpu_custom_call.1} parent=1 // pred_check_branch
      %53 = sbr.rel (0) target = $region21
    $region20: #{tpu_custom_call.1} parent=1 // pred_region
      _
    $region21: #{tpu_custom_call.1} parent=1 // pred_fallthru
      _
    // Predicated region
    $region22: #{tpu_custom_call.1} parent=1 // pred_check
      _
    $region23: #{tpu_custom_call.1} parent=1 // pred_check_branch
      %55 = sbr.rel (0) target = $region25
    $region24: #{tpu_custom_call.1} parent=1 // pred_region
      %s57 = ssub.s32 1024, 1024
      %58 = vsyncadd [#allocation9], %s57
      %s59 = sshll.u32 [#allocation8], 4
      %s60 = int_to_ptr.vmem [resolvable:$true] %s59
      %65 = dma.hbm_to_vmem [thread:$0]  %s5, 1024, %s60, [#allocation9], 64, 64, 4
    $region25: #{tpu_custom_call.1} parent=1 // pred_fallthru
      _
    // Predicated region
    $region26: #{tpu_custom_call.1} parent=1 // pred_check
      _
    $region27: #{tpu_custom_call.1} parent=1 // pred_check_branch
      %67 = sbr.rel (0) target = $region29
    $region28: #{tpu_custom_call.1} parent=1 // pred_region
      _
    $region29: #{tpu_custom_call.1} parent=1 // pred_fallthru
      _
    // Predicated region
    $region30: #{tpu_custom_call.1} parent=1 // pred_check
      _
    $region31: #{tpu_custom_call.1} parent=1 // pred_check_branch
      %69 = sbr.rel (0) target = $region33
    $region32: #{tpu_custom_call.1} parent=1 // pred_region
      %70 = dma.done [#allocation3], 32
    $region33: #{tpu_custom_call.1} parent=1 // pred_fallthru
      _
    // Predicated region
    $region34: #{tpu_custom_call.1} parent=1 // pred_check
      _
    $region35: #{tpu_custom_call.1} parent=1 // pred_check_branch
      %72 = sbr.rel (0) target = $region37
    $region36: #{tpu_custom_call.1} parent=1 // pred_region
      %73 = dma.done [#allocation6], 128
    $region37: #{tpu_custom_call.1} parent=1 // pred_fallthru
      _
    // Predicated region
    $region38: #{tpu_custom_call.1} parent=1 // pred_check
      _
    $region39: #{tpu_custom_call.1} parent=1 // pred_check_branch
      %75 = sbr.rel (0) target = $region41
    $region40: #{tpu_custom_call.1} parent=1 // pred_region
      %76 = dma.done [#allocation6], 1024
    $region41: #{tpu_custom_call.1} parent=1 // pred_fallthru
      _
    // Predicated region
    $region42: #{tpu_custom_call.1} parent=1 // pred_check
      _
    $region43: #{tpu_custom_call.1} parent=1 // pred_check_branch
      %78 = sbr.rel (0) target = $region45
    $region44: #{tpu_custom_call.1} parent=1 // pred_region
      %79 = dma.done [#allocation9], 1024
    $region45: #{tpu_custom_call.1} parent=1 // pred_fallthru
      _
    %v81 = vld [vmem:[#allocation2] sm:$0x3]
    %v82 = vld [vmem:[#allocation5] sm:$0xf]
    %v83 = vld [vmem:[#allocation5 + $0x4] sm:$0xf]
    %v84 = vld [vmem:[%s2] sm:$0x1]
    %v86 = vlaneseq
    %v87 = vshrl.u32 %v86, 7
    %v88 = vsub.s32 0, %v87
    %v89 = vrot.slane %v84, %v88
    %v93 = vunpack.c.l.b16 %v82
    %v94 = vunpack.c.l.b16 %v83
    %v95 = vpack.c.b16 %v94, %v93
    %vm97 = vcmask 130048
    %v99 = vsel %vm97, %v81, 0
    %101 = vmatprep.subr.bf16.mxu0 0
    %102 = vmatpush1.bf16.msra.mxu0 %v95
    %103 = vmatprep.subr.bf16.mxu0 0
    %104 = vmatpush1.bf16.msra.mxu0 0
    %105 = vmatprep.subr.bf16.mxu0 0
    %106 = vmatpush1.bf16.msra.mxu0 0
    %107 = vmatprep.subr.bf16.mxu0 0
    %108 = vmatpush1.bf16.msra.mxu0 0
    %109 = vmatprep.subr.bf16.mxu0 0
    %110 = vmatpush1.bf16.msra.mxu0 0
    %111 = vmatprep.subr.bf16.mxu0 0
    %112 = vmatpush1.bf16.msra.mxu0 0
    %113 = vmatprep.subr.bf16.mxu0 0
    %114 = vmatpush1.bf16.msra.mxu0 0
    %115 = vmatprep.subr.bf16.mxu0 0
    %116 = vmatpush1.bf16.msra.mxu0 0
    %117 = vmatprep.subr.bf16.mxu0 0
    %118 = vmatpush1.bf16.msra.mxu0 0
    %119 = vmatprep.subr.bf16.mxu0 0
    %120 = vmatpush1.bf16.msra.mxu0 0
    %121 = vmatprep.subr.bf16.mxu0 0
    %122 = vmatpush1.bf16.msra.mxu0 0
    %123 = vmatprep.subr.bf16.mxu0 0
    %124 = vmatpush1.bf16.msra.mxu0 0
    %125 = vmatprep.subr.bf16.mxu0 0
    %126 = vmatpush1.bf16.msra.mxu0 0
    %127 = vmatprep.subr.bf16.mxu0 0
    %128 = vmatpush1.bf16.msra.mxu0 0
    %129 = vmatprep.subr.bf16.mxu0 0
    %130 = vmatpush1.bf16.msra.mxu0 0
    %131 = vmatprep.subr.bf16.mxu0 0
    %132 = vmatpush1.bf16.msra.mxu0 0
    %133 = vmatprep.mubr.bf16.mxu0 0
    %134 = vmatmul.mubr.bf16.gmra.mrb[0].mxu0 %v99
    %v135 = vpop.f32.mrb[0].mxu0
    %v136 = vadd.f32 %v89, %v135
    %v137 = vpop.f32.mrb[0].mxu0
    %v138 = vpop.f32.mrb[0].mxu0
    %v139 = vpop.f32.mrb[0].mxu0
    %140 = vdwg.mxu0
    %v141 = vmax.f32 %v136, 0.0
    %v142 = vpack.c.bf16 %v141, %v141
    %v143 = vld [vmem:[#allocation7] sm:$0xf]
    %v144 = vld [vmem:[#allocation7 + $0x4] sm:$0xf]
    %v145 = vld [vmem:[#allocation7 + $0x8] sm:$0xf]
    %v146 = vld [vmem:[#allocation7 + $0xc] sm:$0xf]
    %v147 = vld [vmem:[#allocation7 + $0x10] sm:$0xf]
    %v148 = vld [vmem:[#allocation7 + $0x14] sm:$0xf]
    %v149 = vld [vmem:[#allocation7 + $0x18] sm:$0xf]
    %v150 = vld [vmem:[#allocation7 + $0x1c] sm:$0xf]
    %v151 = vld [vmem:[#allocation7 + $0x20] sm:$0xf]
    %v152 = vld [vmem:[#allocation7 + $0x24] sm:$0xf]
    %v153 = vld [vmem:[#allocation7 + $0x28] sm:$0xf]
    %v154 = vld [vmem:[#allocation7 + $0x2c] sm:$0xf]
    %v155 = vld [vmem:[#allocation7 + $0x30] sm:$0xf]
    %v156 = vld [vmem:[#allocation7 + $0x34] sm:$0xf]
    %v157 = vld [vmem:[#allocation7 + $0x38] sm:$0xf]
    %v158 = vld [vmem:[#allocation7 + $0x3c] sm:$0xf]
    %v159 = vld [vmem:[%s4] sm:$0x1]
    %v161 = vlaneseq
    %v162 = vshrl.u32 %v161, 7
    %v163 = vsub.s32 0, %v162
    %v164 = vrot.slane %v159, %v163
    %v182 = vunpack.c.l.b16 %v143
    %v183 = vunpack.c.l.b16 %v144
    %v184 = vunpack.c.l.b16 %v145
    %v185 = vunpack.c.l.b16 %v146
    %v186 = vunpack.c.l.b16 %v147
    %v187 = vunpack.c.l.b16 %v148
    %v188 = vunpack.c.l.b16 %v149
    %v189 = vunpack.c.l.b16 %v150
    %v190 = vunpack.c.l.b16 %v151
    %v191 = vunpack.c.l.b16 %v152
    %v192 = vunpack.c.l.b16 %v153
    %v193 = vunpack.c.l.b16 %v154
    %v194 = vunpack.c.l.b16 %v155
    %v195 = vunpack.c.l.b16 %v156
    %v196 = vunpack.c.l.b16 %v157
    %v197 = vunpack.c.l.b16 %v158
    %v198 = vpack.c.b16 %v183, %v182
    %v199 = vpack.c.b16 %v185, %v184
    %v200 = vpack.c.b16 %v187, %v186
    %v201 = vpack.c.b16 %v189, %v188
    %v202 = vpack.c.b16 %v191, %v190
    %v203 = vpack.c.b16 %v193, %v192
    %v204 = vpack.c.b16 %v195, %v194
    %v205 = vpack.c.b16 %v197, %v196
    %214 = vmatprep.subr.bf16.mxu0 0
    %215 = vmatpush1.bf16.msra.mxu0 %v198
    %216 = vmatprep.subr.bf16.mxu0 0
    %217 = vmatpush1.bf16.msra.mxu0 %v199
    %218 = vmatprep.subr.bf16.mxu0 0
    %219 = vmatpush1.bf16.msra.mxu0 %v200
    %220 = vmatprep.subr.bf16.mxu0 0
    %221 = vmatpush1.bf16.msra.mxu0 %v201
    %222 = vmatprep.subr.bf16.mxu0 0
    %223 = vmatpush1.bf16.msra.mxu0 %v202
    %224 = vmatprep.subr.bf16.mxu0 0
    %225 = vmatpush1.bf16.msra.mxu0 %v203
    %226 = vmatprep.subr.bf16.mxu0 0
    %227 = vmatpush1.bf16.msra.mxu0 %v204
    %228 = vmatprep.subr.bf16.mxu0 0
    %229 = vmatpush1.bf16.msra.mxu0 %v205
    %230 = vmatprep.subr.bf16.mxu0 0
    %231 = vmatpush1.bf16.msra.mxu0 0
    %232 = vmatprep.subr.bf16.mxu0 0
    %233 = vmatpush1.bf16.msra.mxu0 0
    %234 = vmatprep.subr.bf16.mxu0 0
    %235 = vmatpush1.bf16.msra.mxu0 0
    %236 = vmatprep.subr.bf16.mxu0 0
    %237 = vmatpush1.bf16.msra.mxu0 0
    %238 = vmatprep.subr.bf16.mxu0 0
    %239 = vmatpush1.bf16.msra.mxu0 0
    %240 = vmatprep.subr.bf16.mxu0 0
    %241 = vmatpush1.bf16.msra.mxu0 0
    %242 = vmatprep.subr.bf16.mxu0 0
    %243 = vmatpush1.bf16.msra.mxu0 0
    %244 = vmatprep.subr.bf16.mxu0 0
    %245 = vmatpush1.bf16.msra.mxu0 0
    %246 = vmatprep.mubr.bf16.mxu0 0
    %247 = vmatmul.mubr.bf16.gmra.mrb[0].mxu0 %v142
    %v248 = vpop.f32.mrb[0].mxu0
    %v249 = vadd.f32 %v164, %v248
    %v250 = vpop.f32.mrb[0].mxu0
    %v251 = vpop.f32.mrb[0].mxu0
    %v252 = vpop.f32.mrb[0].mxu0
    %253 = vdwg.mxu0
    %v254 = vmax.f32 %v249, 0.0
    %v255 = vpack.c.bf16 %v254, %v254
    %v256 = vld [vmem:[#allocation8] sm:$0xf]
    %v257 = vld [vmem:[#allocation8 + $0x4] sm:$0xf]
    %v258 = vld [vmem:[#allocation8 + $0x8] sm:$0xf]
    %v259 = vld [vmem:[#allocation8 + $0xc] sm:$0xf]
    %v260 = vld [vmem:[#allocation8 + $0x10] sm:$0xf]
    %v261 = vld [vmem:[#allocation8 + $0x14] sm:$0xf]
    %v262 = vld [vmem:[#allocation8 + $0x18] sm:$0xf]
    %v263 = vld [vmem:[#allocation8 + $0x1c] sm:$0xf]
    %v264 = vld [vmem:[#allocation8 + $0x20] sm:$0xf]
    %v265 = vld [vmem:[#allocation8 + $0x24] sm:$0xf]
    %v266 = vld [vmem:[#allocation8 + $0x28] sm:$0xf]
    %v267 = vld [vmem:[#allocation8 + $0x2c] sm:$0xf]
    %v268 = vld [vmem:[#allocation8 + $0x30] sm:$0xf]
    %v269 = vld [vmem:[#allocation8 + $0x34] sm:$0xf]
    %v270 = vld [vmem:[#allocation8 + $0x38] sm:$0xf]
    %v271 = vld [vmem:[#allocation8 + $0x3c] sm:$0xf]
    %v272 = vld [vmem:[%s6] sm:$0x1]
    %v274 = vlaneseq
    %v275 = vshrl.u32 %v274, 7
    %v276 = vsub.s32 0, %v275
    %v277 = vrot.slane %v272, %v276
    %v295 = vunpack.c.l.b16 %v256
    %v296 = vunpack.c.l.b16 %v257
    %v297 = vunpack.c.l.b16 %v258
    %v298 = vunpack.c.l.b16 %v259
    %v299 = vunpack.c.l.b16 %v260
    %v300 = vunpack.c.l.b16 %v261
    %v301 = vunpack.c.l.b16 %v262
    %v302 = vunpack.c.l.b16 %v263
    %v303 = vunpack.c.l.b16 %v264
    %v304 = vunpack.c.l.b16 %v265
    %v305 = vunpack.c.l.b16 %v266
    %v306 = vunpack.c.l.b16 %v267
    %v307 = vunpack.c.l.b16 %v268
    %v308 = vunpack.c.l.b16 %v269
    %v309 = vunpack.c.l.b16 %v270
    %v310 = vunpack.c.l.b16 %v271
    %v311 = vpack.c.b16 %v296, %v295
    %v312 = vpack.c.b16 %v298, %v297
    %v313 = vpack.c.b16 %v300, %v299
    %v314 = vpack.c.b16 %v302, %v301
    %v315 = vpack.c.b16 %v304, %v303
    %v316 = vpack.c.b16 %v306, %v305
    %v317 = vpack.c.b16 %v308, %v307
    %v318 = vpack.c.b16 %v310, %v309
    %327 = vmatprep.subr.bf16.mxu0 0
    %328 = vmatpush1.bf16.msra.mxu0 %v311
    %329 = vmatprep.subr.bf16.mxu0 0
    %330 = vmatpush1.bf16.msra.mxu0 %v312
    %331 = vmatprep.subr.bf16.mxu0 0
    %332 = vmatpush1.bf16.msra.mxu0 %v313
    %333 = vmatprep.subr.bf16.mxu0 0
    %334 = vmatpush1.bf16.msra.mxu0 %v314
    %335 = vmatprep.subr.bf16.mxu0 0
    %336 = vmatpush1.bf16.msra.mxu0 %v315
    %337 = vmatprep.subr.bf16.mxu0 0
    %338 = vmatpush1.bf16.msra.mxu0 %v316
    %339 = vmatprep.subr.bf16.mxu0 0
    %340 = vmatpush1.bf16.msra.mxu0 %v317
    %341 = vmatprep.subr.bf16.mxu0 0
    %342 = vmatpush1.bf16.msra.mxu0 %v318
    %343 = vmatprep.subr.bf16.mxu0 0
    %344 = vmatpush1.bf16.msra.mxu0 0
    %345 = vmatprep.subr.bf16.mxu0 0
    %346 = vmatpush1.bf16.msra.mxu0 0
    %347 = vmatprep.subr.bf16.mxu0 0
    %348 = vmatpush1.bf16.msra.mxu0 0
    %349 = vmatprep.subr.bf16.mxu0 0
    %350 = vmatpush1.bf16.msra.mxu0 0
    %351 = vmatprep.subr.bf16.mxu0 0
    %352 = vmatpush1.bf16.msra.mxu0 0
    %353 = vmatprep.subr.bf16.mxu0 0
    %354 = vmatpush1.bf16.msra.mxu0 0
    %355 = vmatprep.subr.bf16.mxu0 0
    %356 = vmatpush1.bf16.msra.mxu0 0
    %357 = vmatprep.subr.bf16.mxu0 0
    %358 = vmatpush1.bf16.msra.mxu0 0
    %359 = vmatprep.mubr.bf16.mxu0 0
    %360 = vmatmul.mubr.bf16.gmra.mrb[0].mxu0 %v255
    %v361 = vpop.f32.mrb[0].mxu0
    %v362 = vadd.f32 %v277, %v361
    %v363 = vpop.f32.mrb[0].mxu0
    %v364 = vpop.f32.mrb[0].mxu0
    %v365 = vpop.f32.mrb[0].mxu0
    %366 = vdwg.mxu0
    %vm367 = vcmask 1043456
    %v368 = vsel %vm367, %v362, -inf
    %369 = vmax.xlane.f32.xlu0 %v368
    %v370 = vpop.xlane.xlu0 %369
    %v371 = vsub.f32 %v362, %v370
    %v372 = vmul.f32 %v371, 1.442695
    %v373 = vpow.pop %v372
    %v374 = vsel %vm367, %v373, 0.0
    %375 = vadd.xlane.f32.xlu0 %v374
    %v376 = vpop.xlane.xlu0 %375
    %v377 = vlog2.pop %v376
    %v378 = vmul.f32 %v377, 0.6931472
    %v379 = vsub.f32 %v371, %v378
    %vm380 = vcmask 125952
    %381 = vst.msk [vmem:[#allocation10] sm:$0xf] %vm380, %v379
    // Predicated region
    $region46: #{tpu_custom_call.1} parent=1 // pred_check
      _
    $region47: #{tpu_custom_call.1} parent=1 // pred_check_branch
      %383 = sbr.rel (0) target = $region49
    $region48: #{tpu_custom_call.1} parent=1 // pred_region
      %s385 = ssub.s32 64, 64
      %386 = vsyncadd [#allocation4], %s385
      %s388 = sshll.u32 [#allocation10], 4
      %s389 = int_to_ptr.vmem [resolvable:$true] %s388
      %391 = dma.vmem_to_hbm [thread:$0]  %s389, 64, %s7, [#allocation4]
    $region49: #{tpu_custom_call.1} parent=1 // pred_fallthru
      _
    // Predicated region
    $region50: #{tpu_custom_call.1} parent=1 // pred_check
      _
    $region51: #{tpu_custom_call.1} parent=1 // pred_check_branch
      %393 = sbr.rel (0) target = $region53
    $region52: #{tpu_custom_call.1} parent=1 // pred_region
      %394 = dma.done [#allocation4], 64
    $region53: #{tpu_custom_call.1} parent=1 // pred_fallthru
      _
    %395 = vsyncpa [#allocation3], 1
    %396 = vsyncpa [#allocation6], 1
    %397 = vsyncpa [#allocation9], 1
    %398 = vsyncpa [#allocation4], 1

</llo_original>
